<compile_context>
chip_gen: v7x
topology: tpu7x:2x2x1
jax: 0.10.0
libtpu: 0.0.40
codegen_flags: <defaults>
</compile_context>

<pallas_src>
import functools

import jax
import jax.numpy as jnp
import numpy as np
from jax.experimental import pallas as pl
from jax.experimental.pallas import tpu as pltpu


def rnn_mlp_kernel(x_ref, w_pack_ref, b_pack_ref, out_ref, *, S, B, E, H):
    """Whole recurrence + MLP head, single invocation, everything VMEM-resident.

    x_ref:      (S*B, E)     flattened input sequence, row index = t*B + b
    w_pack_ref: (E+2H, H)    rows [0:E]=W_ih.T, [E:E+H]=W_hh.T, [E+H:E+2H]=W_lin.T
    b_pack_ref: (4, H)       row0=b_ih+b_hh, row1=b_lin, row2=W_out row, row3=b_out
    out_ref:    (B, 1)
    """
    # Static (sublane-aligned) ref slices of the packed weights.
    w_ih = w_pack_ref[0:E, :]                       # (E, H)
    w_hh = w_pack_ref[E:E + H, :]                   # (H, H)
    w_lin = w_pack_ref[E + H:E + 2 * H, :]          # (H, H)

    b_pack = b_pack_ref[...]                        # (4, H)
    b_rnn = b_pack[0:1, :]                          # (1, H)
    b_lin = b_pack[1:2, :]                          # (1, H)
    w_out_row = b_pack[2:3, :]                      # (1, H)
    b_out = b_pack[3:4, 0:1]                        # (1, 1)

    # Hoist the input projection (+ bias) out of the recurrence: one MXU call.
    pre_all = (jnp.dot(x_ref[...], w_ih, preferred_element_type=jnp.float32)
               + b_rnn)                             # (S*B, H)

    # Serial recurrence: only h @ W_hh stays on the critical path.
    h = jnp.zeros((B, H), jnp.float32)
    for t in range(S):                              # S static & tiny -> unrolled
        h = jnp.tanh(pre_all[t * B:(t + 1) * B, :]
                     + jnp.dot(h, w_hh, preferred_element_type=jnp.float32))

    # MLP head: linear -> tanh -> (VPU dot with W_out row) -> sigmoid.
    z = jnp.tanh(jnp.dot(h, w_lin, preferred_element_type=jnp.float32) + b_lin)
    logits = jnp.sum(z * w_out_row, axis=-1, keepdims=True) + b_out   # (B, 1)
    out_ref[...] = jax.nn.sigmoid(logits).astype(out_ref.dtype)


def rnn_classifier(x, params):
    """x: (S, B, E) float32. Returns (B, 1) float32."""
    S, B, E = x.shape
    H = params["w_hh"].shape[0]

    # Layout plumbing hoisted out of the kernel (done once at trace time).
    x_flat = x.reshape(S * B, E)                                   # row = t*B + b
    w_pack = jnp.concatenate(
        [params["w_ih"].T, params["w_hh"].T, params["w_lin"].T], axis=0)  # (E+2H, H)
    b_pack = jnp.stack(
        [params["b_ih"] + params["b_hh"],                          # fused RNN bias
         params["b_lin"],
         params["w_out"].reshape(H),                               # output row
         jnp.broadcast_to(params["b_out"], (H,))], axis=0)         # (4, H)

    kernel = functools.partial(rnn_mlp_kernel, S=S, B=B, E=E, H=H)
    vmem = pl.BlockSpec(memory_space=pltpu.MemorySpace.VMEM)

    return pl.pallas_call(
        kernel,
        out_shape=jax.ShapeDtypeStruct((B, 1), jnp.float32),
        in_specs=[vmem, vmem, vmem],
        out_specs=vmem,
    )(x_flat, w_pack, b_pack)


def init_params(key, embedding_dim, hidden_dim):
    ks = jax.random.split(key, 8)
    # PyTorch-style uniform(-1/sqrt(H), 1/sqrt(H)) init, deterministic.
    bound = 1.0 / np.sqrt(hidden_dim)
    u = lambda k, shape, b: jax.random.uniform(k, shape, jnp.float32, -b, b)
    return {
        "w_ih":  u(ks[0], (hidden_dim, embedding_dim), bound),
        "w_hh":  u(ks[1], (hidden_dim, hidden_dim),   bound),
        "b_ih":  u(ks[2], (hidden_dim,),              bound),
        "b_hh":  u(ks[3], (hidden_dim,),              bound),
        "w_lin": u(ks[4], (hidden_dim, hidden_dim),   bound),
        "b_lin": u(ks[5], (hidden_dim,),              bound),
        "w_out": u(ks[6], (1, hidden_dim),            bound),
        "b_out": u(ks[7], (1,),                       bound),
    }


def reference(x, p):
    S, B, E = x.shape
    H = p["w_hh"].shape[0]
    h = jnp.zeros((B, H), jnp.float32)
    for t in range(S):
        h = jnp.tanh(x[t] @ p["w_ih"].T + p["b_ih"]
                     + h @ p["w_hh"].T + p["b_hh"])
    z = jnp.tanh(h @ p["w_lin"].T + p["b_lin"])
    return jax.nn.sigmoid(z @ p["w_out"].T + p["b_out"])


if __name__ == "__main__":
    seq_len, batch_size, embedding_dim, hidden_dim = 8, 2, 16, 32
    key = jax.random.PRNGKey(0)
    kx, kp = jax.random.split(key)
    x = jax.random.normal(kx, (seq_len, batch_size, embedding_dim), jnp.float32)
    params = init_params(kp, embedding_dim, hidden_dim)

    out = rnn_classifier(x, params)
    out = jax.block_until_ready(out)

    ref = reference(x, params)
    np.testing.assert_allclose(np.asarray(out), np.asarray(ref),
                               rtol=1e-5, atol=1e-5)
    assert out.shape == (batch_size, 1)
    print("KERNEL_OK")
</pallas_src>

<mosaic_0001>
module attributes {stable_mosaic.version = 11 : i64} {
  func.func @rnn_mlp_kernel(%arg0: memref<16x16xf32, #tpu.memory_space<vmem>>, %arg1: memref<80x32xf32, #tpu.memory_space<vmem>>, %arg2: memref<4x32xf32, #tpu.memory_space<vmem>>, %arg3: memref<2x1xf32, #tpu.memory_space<vmem>>) attributes {dimension_semantics = [], scalar_prefetch = 0 : i64, scratch_operands = 0 : i64, tpu.core_type = #tpu.core_type<tc>} {
    %c0 = arith.constant 0 : index
    %c0_0 = arith.constant 0 : index
    %0 = vector.load %arg1[%c0, %c0_0] : memref<80x32xf32, #tpu.memory_space<vmem>>, vector<16x32xf32>
    %c16 = arith.constant 16 : index
    %c0_1 = arith.constant 0 : index
    %1 = vector.load %arg1[%c16, %c0_1] : memref<80x32xf32, #tpu.memory_space<vmem>>, vector<32x32xf32>
    %c48 = arith.constant 48 : index
    %c0_2 = arith.constant 0 : index
    %2 = vector.load %arg1[%c48, %c0_2] : memref<80x32xf32, #tpu.memory_space<vmem>>, vector<32x32xf32>
    %c0_3 = arith.constant 0 : index
    %c0_4 = arith.constant 0 : index
    %3 = vector.load %arg2[%c0_3, %c0_4] : memref<4x32xf32, #tpu.memory_space<vmem>>, vector<4x32xf32>
    %4 = vector.extract_strided_slice %3 {offsets = [0, 0], sizes = [1, 32], strides = [1, 1]} : vector<4x32xf32> to vector<1x32xf32>
    %5 = vector.extract_strided_slice %3 {offsets = [1, 0], sizes = [1, 32], strides = [1, 1]} : vector<4x32xf32> to vector<1x32xf32>
    %6 = vector.extract_strided_slice %3 {offsets = [2, 0], sizes = [1, 32], strides = [1, 1]} : vector<4x32xf32> to vector<1x32xf32>
    %7 = vector.extract_strided_slice %3 {offsets = [3, 0], sizes = [1, 1], strides = [1, 1]} : vector<4x32xf32> to vector<1x1xf32>
    %c0_5 = arith.constant 0 : index
    %c0_6 = arith.constant 0 : index
    %8 = vector.load %arg0[%c0_5, %c0_6] : memref<16x16xf32, #tpu.memory_space<vmem>>, vector<16x16xf32>
    %cst = arith.constant dense<0.000000e+00> : vector<16x32xf32>
    %9 = tpu.matmul %8, %0, %cst {dimension_numbers = #tpu.dot_dimension_numbers<[1], [0], [0], [1], [0, 0, 1, 1], [], []>} : vector<16x16xf32>, vector<16x32xf32>, vector<16x32xf32> -> vector<16x32xf32>
    %10 = vector.broadcast %4 : vector<1x32xf32> to vector<16x32xf32>
    %11 = arith.addf %9, %10 : vector<16x32xf32>
    %cst_7 = arith.constant 0.000000e+00 : f32
    %12 = vector.broadcast %cst_7 : f32 to vector<2x32xf32>
    %13 = vector.extract_strided_slice %11 {offsets = [0, 0], sizes = [2, 32], strides = [1, 1]} : vector<16x32xf32> to vector<2x32xf32>
    %cst_8 = arith.constant dense<0.000000e+00> : vector<2x32xf32>
    %14 = tpu.matmul %12, %1, %cst_8 {dimension_numbers = #tpu.dot_dimension_numbers<[1], [0], [0], [1], [0, 0, 1, 1], [], []>} : vector<2x32xf32>, vector<32x32xf32>, vector<2x32xf32> -> vector<2x32xf32>
    %15 = arith.addf %13, %14 : vector<2x32xf32>
    %16 = math.tanh %15 : vector<2x32xf32>
    %17 = vector.extract_strided_slice %11 {offsets = [2, 0], sizes = [2, 32], strides = [1, 1]} : vector<16x32xf32> to vector<2x32xf32>
    %cst_9 = arith.constant dense<0.000000e+00> : vector<2x32xf32>
    %18 = tpu.matmul %16, %1, %cst_9 {dimension_numbers = #tpu.dot_dimension_numbers<[1], [0], [0], [1], [0, 0, 1, 1], [], []>} : vector<2x32xf32>, vector<32x32xf32>, vector<2x32xf32> -> vector<2x32xf32>
    %19 = arith.addf %17, %18 : vector<2x32xf32>
    %20 = math.tanh %19 : vector<2x32xf32>
    %21 = vector.extract_strided_slice %11 {offsets = [4, 0], sizes = [2, 32], strides = [1, 1]} : vector<16x32xf32> to vector<2x32xf32>
    %cst_10 = arith.constant dense<0.000000e+00> : vector<2x32xf32>
    %22 = tpu.matmul %20, %1, %cst_10 {dimension_numbers = #tpu.dot_dimension_numbers<[1], [0], [0], [1], [0, 0, 1, 1], [], []>} : vector<2x32xf32>, vector<32x32xf32>, vector<2x32xf32> -> vector<2x32xf32>
    %23 = arith.addf %21, %22 : vector<2x32xf32>
    %24 = math.tanh %23 : vector<2x32xf32>
    %25 = vector.extract_strided_slice %11 {offsets = [6, 0], sizes = [2, 32], strides = [1, 1]} : vector<16x32xf32> to vector<2x32xf32>
    %cst_11 = arith.constant dense<0.000000e+00> : vector<2x32xf32>
    %26 = tpu.matmul %24, %1, %cst_11 {dimension_numbers = #tpu.dot_dimension_numbers<[1], [0], [0], [1], [0, 0, 1, 1], [], []>} : vector<2x32xf32>, vector<32x32xf32>, vector<2x32xf32> -> vector<2x32xf32>
    %27 = arith.addf %25, %26 : vector<2x32xf32>
    %28 = math.tanh %27 : vector<2x32xf32>
    %29 = vector.extract_strided_slice %11 {offsets = [8, 0], sizes = [2, 32], strides = [1, 1]} : vector<16x32xf32> to vector<2x32xf32>
    %cst_12 = arith.constant dense<0.000000e+00> : vector<2x32xf32>
    %30 = tpu.matmul %28, %1, %cst_12 {dimension_numbers = #tpu.dot_dimension_numbers<[1], [0], [0], [1], [0, 0, 1, 1], [], []>} : vector<2x32xf32>, vector<32x32xf32>, vector<2x32xf32> -> vector<2x32xf32>
    %31 = arith.addf %29, %30 : vector<2x32xf32>
    %32 = math.tanh %31 : vector<2x32xf32>
    %33 = vector.extract_strided_slice %11 {offsets = [10, 0], sizes = [2, 32], strides = [1, 1]} : vector<16x32xf32> to vector<2x32xf32>
    %cst_13 = arith.constant dense<0.000000e+00> : vector<2x32xf32>
    %34 = tpu.matmul %32, %1, %cst_13 {dimension_numbers = #tpu.dot_dimension_numbers<[1], [0], [0], [1], [0, 0, 1, 1], [], []>} : vector<2x32xf32>, vector<32x32xf32>, vector<2x32xf32> -> vector<2x32xf32>
    %35 = arith.addf %33, %34 : vector<2x32xf32>
    %36 = math.tanh %35 : vector<2x32xf32>
    %37 = vector.extract_strided_slice %11 {offsets = [12, 0], sizes = [2, 32], strides = [1, 1]} : vector<16x32xf32> to vector<2x32xf32>
    %cst_14 = arith.constant dense<0.000000e+00> : vector<2x32xf32>
    %38 = tpu.matmul %36, %1, %cst_14 {dimension_numbers = #tpu.dot_dimension_numbers<[1], [0], [0], [1], [0, 0, 1, 1], [], []>} : vector<2x32xf32>, vector<32x32xf32>, vector<2x32xf32> -> vector<2x32xf32>
    %39 = arith.addf %37, %38 : vector<2x32xf32>
    %40 = math.tanh %39 : vector<2x32xf32>
    %41 = vector.extract_strided_slice %11 {offsets = [14, 0], sizes = [2, 32], strides = [1, 1]} : vector<16x32xf32> to vector<2x32xf32>
    %cst_15 = arith.constant dense<0.000000e+00> : vector<2x32xf32>
    %42 = tpu.matmul %40, %1, %cst_15 {dimension_numbers = #tpu.dot_dimension_numbers<[1], [0], [0], [1], [0, 0, 1, 1], [], []>} : vector<2x32xf32>, vector<32x32xf32>, vector<2x32xf32> -> vector<2x32xf32>
    %43 = arith.addf %41, %42 : vector<2x32xf32>
    %44 = math.tanh %43 : vector<2x32xf32>
    %cst_16 = arith.constant dense<0.000000e+00> : vector<2x32xf32>
    %45 = tpu.matmul %44, %2, %cst_16 {dimension_numbers = #tpu.dot_dimension_numbers<[1], [0], [0], [1], [0, 0, 1, 1], [], []>} : vector<2x32xf32>, vector<32x32xf32>, vector<2x32xf32> -> vector<2x32xf32>
    %46 = vector.broadcast %5 : vector<1x32xf32> to vector<2x32xf32>
    %47 = arith.addf %45, %46 : vector<2x32xf32>
    %48 = math.tanh %47 : vector<2x32xf32>
    %49 = vector.broadcast %6 : vector<1x32xf32> to vector<2x32xf32>
    %50 = arith.mulf %48, %49 : vector<2x32xf32>
    %cst_17 = arith.constant dense<0.000000e+00> : vector<2xf32>
    %51 = vector.multi_reduction <add>, %50, %cst_17 [1] : vector<2x32xf32> to vector<2xf32>
    %52 = vector.shape_cast %51 : vector<2xf32> to vector<2x1xf32>
    %53 = vector.broadcast %7 : vector<1x1xf32> to vector<2x1xf32>
    %54 = arith.addf %52, %53 : vector<2x1xf32>
    %55 = arith.negf %54 : vector<2x1xf32>
    %56 = math.exp %55 : vector<2x1xf32>
    %cst_18 = arith.constant 1.000000e+00 : f32
    %57 = vector.broadcast %cst_18 : f32 to vector<2x1xf32>
    %58 = arith.addf %57, %56 : vector<2x1xf32>
    %59 = arith.divf %57, %58 : vector<2x1xf32>
    %c0_19 = arith.constant 0 : index
    %c0_20 = arith.constant 0 : index
    %60 = vector.load %arg3[%c0_19, %c0_20] : memref<2x1xf32, #tpu.memory_space<vmem>>, vector<2x1xf32>
    tpu.vector_store %arg3[%c0_19, %c0_20], %59 {strides = array<i32>} : memref<2x1xf32, #tpu.memory_space<vmem>>, vector<2x1xf32>,
    return
  }
}

</mosaic_0001>

<llo_original>
// kernel: tpu_custom_call.1
$region0: #{tpu_custom_call.1}
  #allocation0 [shape = 'u32[]', space=smem, size = 0x4, offset = 0x4, fixed_abs, tag = 'smem constant byte address 0x4 - core index']
  #allocation1 [shape = 'u32[144,128]{1,0:T(1,128)}', space=vmem, size = 0x12000, scoped, tag = 'internal scratch']
  %s0 = inlined_call_operand.vmem [shape: f32[16,16], index: 0, kind: input, shape index: {}]
  %s1 = inlined_call_operand.vmem [shape: f32[80,32], index: 1, kind: input, shape index: {}]
  %s2 = inlined_call_operand.vmem [shape: f32[4,32], index: 2, kind: input, shape index: {}]
  %s3 = inlined_call_operand.vmem [shape: f32[2,1], index: 3, kind: output, shape index: {}]
  %s4 = sld [smem:[#allocation0]]
  $region22: #{tpu_custom_call.1} parent=0
    _
  %s6 = ssub.s32 1, %s4
  %s7 = scalar_select 0, %s6, %s4
  // Predicated region
  $region2: #{tpu_custom_call.1} parent=0 // pred_check
    _
  $region3: #{tpu_custom_call.1} parent=0 // pred_check_branch
    %9 = sbr.rel (0) target = $region5
  $region4: #{tpu_custom_call.1} parent=0 // pred_region
    _
  $region5: #{tpu_custom_call.1} parent=0 // pred_fallthru
    _
  // Predicated region
  $region6: #{tpu_custom_call.1} parent=0 // pred_check
    _
  $region7: #{tpu_custom_call.1} parent=0 // pred_check_branch
    %11 = sbr.rel (0) target = $region9
  $region8: #{tpu_custom_call.1} parent=0 // pred_region
    _
  $region9: #{tpu_custom_call.1} parent=0 // pred_fallthru
    _
  // Predicated region
  $region10: #{tpu_custom_call.1} parent=0 // pred_check
    _
  $region11: #{tpu_custom_call.1} parent=0 // pred_check_branch
    %13 = sbr.rel (0) target = $region13
  $region12: #{tpu_custom_call.1} parent=0 // pred_region
    _
  $region13: #{tpu_custom_call.1} parent=0 // pred_fallthru
    _
  %v14 = vld [vmem:[%s1] sm:$0xff]
  %v15 = vld [vmem:[%s1 + $0x8] sm:$0xff]
  %v16 = vld [vmem:[%s1 + $0x10] sm:$0xff]
  %v17 = vld [vmem:[%s1 + $0x18] sm:$0xff]
  %v18 = vld [vmem:[%s1 + $0x20] sm:$0xff]
  %v19 = vld [vmem:[%s1 + $0x28] sm:$0xff]
  %v20 = vld [vmem:[%s1 + $0x30] sm:$0xff]
  %v21 = vld [vmem:[%s1 + $0x38] sm:$0xff]
  %v22 = vld [vmem:[%s1 + $0x40] sm:$0xff]
  %v23 = vld [vmem:[%s1 + $0x48] sm:$0xff]
  %v24 = vld [vmem:[%s2] sm:$0xf]
  %v25 = vld [vmem:[%s0] sm:$0xff]
  %v26 = vld [vmem:[%s0 + $0x8] sm:$0xff]
  %v27 = vlaneseq
  %v28 = vshrl.u32 %v27, 7
  %v29 = vsub.s32 0, %v28
  %v30 = vrot.slane %v24, %v29
  %vm31 = vcmask 130048
  %v33 = vsel %vm31, %v25, 0
  %v36 = vsel %vm31, %v26, 0
  %38 = vmatprep.subr.mxu0 0.0
  %39 = vmatpush1.msra.mxu0 %v14
  %40 = vmatprep.subr.mxu0 0.0
  %41 = vmatpush1.msra.mxu0 %v15
  %42 = vmatprep.subr.mxu0 0.0
  %43 = vmatpush1.msra.mxu0 0.0
  %44 = vmatprep.subr.mxu0 0.0
  %45 = vmatpush1.msra.mxu0 0.0
  %46 = vmatprep.subr.mxu0 0.0
  %47 = vmatpush1.msra.mxu0 0.0
  %48 = vmatprep.subr.mxu0 0.0
  %49 = vmatpush1.msra.mxu0 0.0
  %50 = vmatprep.subr.mxu0 0.0
  %51 = vmatpush1.msra.mxu0 0.0
  %52 = vmatprep.subr.mxu0 0.0
  %53 = vmatpush1.msra.mxu0 0.0
  %54 = vmatprep.subr.mxu0 0.0
  %55 = vmatpush1.msra.mxu0 0.0
  %56 = vmatprep.subr.mxu0 0.0
  %57 = vmatpush1.msra.mxu0 0.0
  %58 = vmatprep.subr.mxu0 0.0
  %59 = vmatpush1.msra.mxu0 0.0
  %60 = vmatprep.subr.mxu0 0.0
  %61 = vmatpush1.msra.mxu0 0.0
  %62 = vmatprep.subr.mxu0 0.0
  %63 = vmatpush1.msra.mxu0 0.0
  %64 = vmatprep.subr.mxu0 0.0
  %65 = vmatpush1.msra.mxu0 0.0
  %66 = vmatprep.subr.mxu0 0.0
  %67 = vmatpush1.msra.mxu0 0.0
  %68 = vmatprep.subr.mxu0 0.0
  %69 = vmatpush1.msra.mxu0 0.0
  %70 = vmatprep.subr.mxu0 0.0
  %71 = vmatpush1.msra.mxu0 0.0
  %72 = vmatprep.subr.mxu0 0.0
  %73 = vmatpush1.msra.mxu0 0.0
  %74 = vmatprep.subr.mxu0 0.0
  %75 = vmatpush1.msra.mxu0 0.0
  %76 = vmatprep.subr.mxu0 0.0
  %77 = vmatpush1.msra.mxu0 0.0
  %78 = vmatprep.subr.mxu0 0.0
  %79 = vmatpush1.msra.mxu0 0.0
  %80 = vmatprep.subr.mxu0 0.0
  %81 = vmatpush1.msra.mxu0 0.0
  %82 = vmatprep.subr.mxu0 0.0
  %83 = vmatpush1.msra.mxu0 0.0
  %84 = vmatprep.subr.mxu0 0.0
  %85 = vmatpush1.msra.mxu0 0.0
  %86 = vmatprep.subr.mxu0 0.0
  %87 = vmatpush1.msra.mxu0 0.0
  %88 = vmatprep.subr.mxu0 0.0
  %89 = vmatpush1.msra.mxu0 0.0
  %90 = vmatprep.subr.mxu0 0.0
  %91 = vmatpush1.msra.mxu0 0.0
  %92 = vmatprep.subr.mxu0 0.0
  %93 = vmatpush1.msra.mxu0 0.0
  %94 = vmatprep.subr.mxu0 0.0
  %95 = vmatpush1.msra.mxu0 0.0
  %96 = vmatprep.subr.mxu0 0.0
  %97 = vmatpush1.msra.mxu0 0.0
  %98 = vmatprep.subr.mxu0 0.0
  %99 = vmatpush1.msra.mxu0 0.0
  %100 = vmatprep.subr.mxu0 0.0
  %101 = vmatpush1.msra.mxu0 0.0
  %102 = vmatprep.mubr.f32.mxu0 0.0
  %103 = vmatmul.mubr.f32.gmra.mrb[0].mxu0 %v33
  %v104 = vpop.f32.mrb[0].mxu0
  %v105 = vadd.f32 %v30, %v104
  %v106 = vpop.f32.mrb[0].mxu0
  %107 = vmatprep.mubr.f32.mxu0 0.0
  %108 = vmatmul.mubr.f32.gmra.mrb[0].mxu0 %v36
  %v109 = vpop.f32.mrb[0].mxu0
  %v110 = vadd.f32 %v30, %v109
  %v111 = vpop.f32.mrb[0].mxu0
  %112 = vdwg.mxu0
  %vm113 = vcmask 261120
  %v115 = vsel %vm113, 0.0, 0
  %117 = vmatprep.subr.mxu0 0.0
  %118 = vmatpush1.msra.mxu0 %v16
  %119 = vmatprep.subr.mxu0 0.0
  %120 = vmatpush1.msra.mxu0 %v17
  %121 = vmatprep.subr.mxu0 0.0
  %122 = vmatpush1.msra.mxu0 %v18
  %123 = vmatprep.subr.mxu0 0.0
  %124 = vmatpush1.msra.mxu0 %v19
  %125 = vmatprep.subr.mxu0 0.0
  %126 = vmatpush1.msra.mxu0 0.0
  %127 = vmatprep.subr.mxu0 0.0
  %128 = vmatpush1.msra.mxu0 0.0
  %129 = vmatprep.subr.mxu0 0.0
  %130 = vmatpush1.msra.mxu0 0.0
  %131 = vmatprep.subr.mxu0 0.0
  %132 = vmatpush1.msra.mxu0 0.0
  %133 = vmatprep.subr.mxu0 0.0
  %134 = vmatpush1.msra.mxu0 0.0
  %135 = vmatprep.subr.mxu0 0.0
  %136 = vmatpush1.msra.mxu0 0.0
  %137 = vmatprep.subr.mxu0 0.0
  %138 = vmatpush1.msra.mxu0 0.0
  %139 = vmatprep.subr.mxu0 0.0
  %140 = vmatpush1.msra.mxu0 0.0
  %141 = vmatprep.subr.mxu0 0.0
  %142 = vmatpush1.msra.mxu0 0.0
  %143 = vmatprep.subr.mxu0 0.0
  %144 = vmatpush1.msra.mxu0 0.0
  %145 = vmatprep.subr.mxu0 0.0
  %146 = vmatpush1.msra.mxu0 0.0
  %147 = vmatprep.subr.mxu0 0.0
  %148 = vmatpush1.msra.mxu0 0.0
  %149 = vmatprep.subr.mxu0 0.0
  %150 = vmatpush1.msra.mxu0 0.0
  %151 = vmatprep.subr.mxu0 0.0
  %152 = vmatpush1.msra.mxu0 0.0
  %153 = vmatprep.subr.mxu0 0.0
  %154 = vmatpush1.msra.mxu0 0.0
  %155 = vmatprep.subr.mxu0 0.0
  %156 = vmatpush1.msra.mxu0 0.0
  %157 = vmatprep.subr.mxu0 0.0
  %158 = vmatpush1.msra.mxu0 0.0
  %159 = vmatprep.subr.mxu0 0.0
  %160 = vmatpush1.msra.mxu0 0.0
  %161 = vmatprep.subr.mxu0 0.0
  %162 = vmatpush1.msra.mxu0 0.0
  %163 = vmatprep.subr.mxu0 0.0
  %164 = vmatpush1.msra.mxu0 0.0
  %165 = vmatprep.subr.mxu0 0.0
  %166 = vmatpush1.msra.mxu0 0.0
  %167 = vmatprep.subr.mxu0 0.0
  %168 = vmatpush1.msra.mxu0 0.0
  %169 = vmatprep.subr.mxu0 0.0
  %170 = vmatpush1.msra.mxu0 0.0
  %171 = vmatprep.subr.mxu0 0.0
  %172 = vmatpush1.msra.mxu0 0.0
  %173 = vmatprep.subr.mxu0 0.0
  %174 = vmatpush1.msra.mxu0 0.0
  %175 = vmatprep.subr.mxu0 0.0
  %176 = vmatpush1.msra.mxu0 0.0
  %177 = vmatprep.subr.mxu0 0.0
  %178 = vmatpush1.msra.mxu0 0.0
  %179 = vmatprep.subr.mxu0 0.0
  %180 = vmatpush1.msra.mxu0 0.0
  %181 = vmatprep.mubr.f32.mxu0 0.0
  %182 = vmatmul.mubr.f32.gmra.mrb[0].mxu0 %v115
  %v183 = vpop.f32.mrb[0].mxu0
  %v184 = vadd.f32 0.0, %v183
  %v185 = vpop.f32.mrb[0].mxu0
  %186 = vdwg.mxu0
  %v187 = vadd.f32 %v105, %v184
  %v188 = vtanh.pop %v187
  %v190 = vsel %vm113, %v188, 0
  %192 = vmatprep.subr.mxu0 0.0
  %193 = vmatpush1.msra.mxu0 %v16
  %194 = vmatprep.subr.mxu0 0.0
  %195 = vmatpush1.msra.mxu0 %v17
  %196 = vmatprep.subr.mxu0 0.0
  %197 = vmatpush1.msra.mxu0 %v18
  %198 = vmatprep.subr.mxu0 0.0
  %199 = vmatpush1.msra.mxu0 %v19
  %200 = vmatprep.subr.mxu0 0.0
  %201 = vmatpush1.msra.mxu0 0.0
  %202 = vmatprep.subr.mxu0 0.0
  %203 = vmatpush1.msra.mxu0 0.0
  %204 = vmatprep.subr.mxu0 0.0
  %205 = vmatpush1.msra.mxu0 0.0
  %206 = vmatprep.subr.mxu0 0.0
  %207 = vmatpush1.msra.mxu0 0.0
  %208 = vmatprep.subr.mxu0 0.0
  %209 = vmatpush1.msra.mxu0 0.0
  %210 = vmatprep.subr.mxu0 0.0
  %211 = vmatpush1.msra.mxu0 0.0
  %212 = vmatprep.subr.mxu0 0.0
  %213 = vmatpush1.msra.mxu0 0.0
  %214 = vmatprep.subr.mxu0 0.0
  %215 = vmatpush1.msra.mxu0 0.0
  %216 = vmatprep.subr.mxu0 0.0
  %217 = vmatpush1.msra.mxu0 0.0
  %218 = vmatprep.subr.mxu0 0.0
  %219 = vmatpush1.msra.mxu0 0.0
  %220 = vmatprep.subr.mxu0 0.0
  %221 = vmatpush1.msra.mxu0 0.0
  %222 = vmatprep.subr.mxu0 0.0
  %223 = vmatpush1.msra.mxu0 0.0
  %224 = vmatprep.subr.mxu0 0.0
  %225 = vmatpush1.msra.mxu0 0.0
  %226 = vmatprep.subr.mxu0 0.0
  %227 = vmatpush1.msra.mxu0 0.0
  %228 = vmatprep.subr.mxu0 0.0
  %229 = vmatpush1.msra.mxu0 0.0
  %230 = vmatprep.subr.mxu0 0.0
  %231 = vmatpush1.msra.mxu0 0.0
  %232 = vmatprep.subr.mxu0 0.0
  %233 = vmatpush1.msra.mxu0 0.0
  %234 = vmatprep.subr.mxu0 0.0
  %235 = vmatpush1.msra.mxu0 0.0
  %236 = vmatprep.subr.mxu0 0.0
  %237 = vmatpush1.msra.mxu0 0.0
  %238 = vmatprep.subr.mxu0 0.0
  %239 = vmatpush1.msra.mxu0 0.0
  %240 = vmatprep.subr.mxu0 0.0
  %241 = vmatpush1.msra.mxu0 0.0
  %242 = vmatprep.subr.mxu0 0.0
  %243 = vmatpush1.msra.mxu0 0.0
  %244 = vmatprep.subr.mxu0 0.0
  %245 = vmatpush1.msra.mxu0 0.0
  %246 = vmatprep.subr.mxu0 0.0
  %247 = vmatpush1.msra.mxu0 0.0
  %248 = vmatprep.subr.mxu0 0.0
  %249 = vmatpush1.msra.mxu0 0.0
  %250 = vmatprep.subr.mxu0 0.0
  %251 = vmatpush1.msra.mxu0 0.0
  %252 = vmatprep.subr.mxu0 0.0
  %253 = vmatpush1.msra.mxu0 0.0
  %254 = vmatprep.subr.mxu0 0.0
  %255 = vmatpush1.msra.mxu0 0.0
  %256 = vmatprep.mubr.f32.mxu0 0.0
  %257 = vmatmul.mubr.f32.gmra.mrb[0].mxu0 %v190
  %v258 = vpop.f32.mrb[0].mxu0
  %v259 = vadd.f32 0.0, %v258
  %v260 = vpop.f32.mrb[0].mxu0
  %261 = vdwg.mxu0
  %v263 = vrot.slane %v259, 6
  %v265 = vadd.f32 %v105, %v263
  %v266 = vtanh.pop %v265
  %v268 = vrot.slane %v266, 2
  %v269 = vsel %vm113, %v268, 0
  %271 = vmatprep.subr.mxu0 0.0
  %272 = vmatpush1.msra.mxu0 %v16
  %273 = vmatprep.subr.mxu0 0.0
  %274 = vmatpush1.msra.mxu0 %v17
  %275 = vmatprep.subr.mxu0 0.0
  %276 = vmatpush1.msra.mxu0 %v18
  %277 = vmatprep.subr.mxu0 0.0
  %278 = vmatpush1.msra.mxu0 %v19
  %279 = vmatprep.subr.mxu0 0.0
  %280 = vmatpush1.msra.mxu0 0.0
  %281 = vmatprep.subr.mxu0 0.0
  %282 = vmatpush1.msra.mxu0 0.0
  %283 = vmatprep.subr.mxu0 0.0
  %284 = vmatpush1.msra.mxu0 0.0
  %285 = vmatprep.subr.mxu0 0.0
  %286 = vmatpush1.msra.mxu0 0.0
  %287 = vmatprep.subr.mxu0 0.0
  %288 = vmatpush1.msra.mxu0 0.0
  %289 = vmatprep.subr.mxu0 0.0
  %290 = vmatpush1.msra.mxu0 0.0
  %291 = vmatprep.subr.mxu0 0.0
  %292 = vmatpush1.msra.mxu0 0.0
  %293 = vmatprep.subr.mxu0 0.0
  %294 = vmatpush1.msra.mxu0 0.0
  %295 = vmatprep.subr.mxu0 0.0
  %296 = vmatpush1.msra.mxu0 0.0
  %297 = vmatprep.subr.mxu0 0.0
  %298 = vmatpush1.msra.mxu0 0.0
  %299 = vmatprep.subr.mxu0 0.0
  %300 = vmatpush1.msra.mxu0 0.0
  %301 = vmatprep.subr.mxu0 0.0
  %302 = vmatpush1.msra.mxu0 0.0
  %303 = vmatprep.subr.mxu0 0.0
  %304 = vmatpush1.msra.mxu0 0.0
  %305 = vmatprep.subr.mxu0 0.0
  %306 = vmatpush1.msra.mxu0 0.0
  %307 = vmatprep.subr.mxu0 0.0
  %308 = vmatpush1.msra.mxu0 0.0
  %309 = vmatprep.subr.mxu0 0.0
  %310 = vmatpush1.msra.mxu0 0.0
  %311 = vmatprep.subr.mxu0 0.0
  %312 = vmatpush1.msra.mxu0 0.0
  %313 = vmatprep.subr.mxu0 0.0
  %314 = vmatpush1.msra.mxu0 0.0
  %315 = vmatprep.subr.mxu0 0.0
  %316 = vmatpush1.msra.mxu0 0.0
  %317 = vmatprep.subr.mxu0 0.0
  %318 = vmatpush1.msra.mxu0 0.0
  %319 = vmatprep.subr.mxu0 0.0
  %320 = vmatpush1.msra.mxu0 0.0
  %321 = vmatprep.subr.mxu0 0.0
  %322 = vmatpush1.msra.mxu0 0.0
  %323 = vmatprep.subr.mxu0 0.0
  %324 = vmatpush1.msra.mxu0 0.0
  %325 = vmatprep.subr.mxu0 0.0
  %326 = vmatpush1.msra.mxu0 0.0
  %327 = vmatprep.subr.mxu0 0.0
  %328 = vmatpush1.msra.mxu0 0.0
  %329 = vmatprep.subr.mxu0 0.0
  %330 = vmatpush1.msra.mxu0 0.0
  %331 = vmatprep.subr.mxu0 0.0
  %332 = vmatpush1.msra.mxu0 0.0
  %333 = vmatprep.subr.mxu0 0.0
  %334 = vmatpush1.msra.mxu0 0.0
  %335 = vmatprep.mubr.f32.mxu0 0.0
  %336 = vmatmul.mubr.f32.gmra.mrb[0].mxu0 %v269
  %v337 = vpop.f32.mrb[0].mxu0
  %v338 = vadd.f32 0.0, %v337
  %v339 = vpop.f32.mrb[0].mxu0
  %340 = vdwg.mxu0
  %v342 = vrot.slane %v338, 4
  %v344 = vadd.f32 %v105, %v342
  %v345 = vtanh.pop %v344
  %v347 = vrot.slane %v345, 4
  %v348 = vsel %vm113, %v347, 0
  %350 = vmatprep.subr.mxu0 0.0
  %351 = vmatpush1.msra.mxu0 %v16
  %352 = vmatprep.subr.mxu0 0.0
  %353 = vmatpush1.msra.mxu0 %v17
  %354 = vmatprep.subr.mxu0 0.0
  %355 = vmatpush1.msra.mxu0 %v18
  %356 = vmatprep.subr.mxu0 0.0
  %357 = vmatpush1.msra.mxu0 %v19
  %358 = vmatprep.subr.mxu0 0.0
  %359 = vmatpush1.msra.mxu0 0.0
  %360 = vmatprep.subr.mxu0 0.0
  %361 = vmatpush1.msra.mxu0 0.0
  %362 = vmatprep.subr.mxu0 0.0
  %363 = vmatpush1.msra.mxu0 0.0
  %364 = vmatprep.subr.mxu0 0.0
  %365 = vmatpush1.msra.mxu0 0.0
  %366 = vmatprep.subr.mxu0 0.0
  %367 = vmatpush1.msra.mxu0 0.0
  %368 = vmatprep.subr.mxu0 0.0
  %369 = vmatpush1.msra.mxu0 0.0
  %370 = vmatprep.subr.mxu0 0.0
  %371 = vmatpush1.msra.mxu0 0.0
  %372 = vmatprep.subr.mxu0 0.0
  %373 = vmatpush1.msra.mxu0 0.0
  %374 = vmatprep.subr.mxu0 0.0
  %375 = vmatpush1.msra.mxu0 0.0
  %376 = vmatprep.subr.mxu0 0.0
  %377 = vmatpush1.msra.mxu0 0.0
  %378 = vmatprep.subr.mxu0 0.0
  %379 = vmatpush1.msra.mxu0 0.0
  %380 = vmatprep.subr.mxu0 0.0
  %381 = vmatpush1.msra.mxu0 0.0
  %382 = vmatprep.subr.mxu0 0.0
  %383 = vmatpush1.msra.mxu0 0.0
  %384 = vmatprep.subr.mxu0 0.0
  %385 = vmatpush1.msra.mxu0 0.0
  %386 = vmatprep.subr.mxu0 0.0
  %387 = vmatpush1.msra.mxu0 0.0
  %388 = vmatprep.subr.mxu0 0.0
  %389 = vmatpush1.msra.mxu0 0.0
  %390 = vmatprep.subr.mxu0 0.0
  %391 = vmatpush1.msra.mxu0 0.0
  %392 = vmatprep.subr.mxu0 0.0
  %393 = vmatpush1.msra.mxu0 0.0
  %394 = vmatprep.subr.mxu0 0.0
  %395 = vmatpush1.msra.mxu0 0.0
  %396 = vmatprep.subr.mxu0 0.0
  %397 = vmatpush1.msra.mxu0 0.0
  %398 = vmatprep.subr.mxu0 0.0
  %399 = vmatpush1.msra.mxu0 0.0
  %400 = vmatprep.subr.mxu0 0.0
  %401 = vmatpush1.msra.mxu0 0.0
  %402 = vmatprep.subr.mxu0 0.0
  %403 = vmatpush1.msra.mxu0 0.0
  %404 = vmatprep.subr.mxu0 0.0
  %405 = vmatpush1.msra.mxu0 0.0
  %406 = vmatprep.subr.mxu0 0.0
  %407 = vmatpush1.msra.mxu0 0.0
  %408 = vmatprep.subr.mxu0 0.0
  %409 = vmatpush1.msra.mxu0 0.0
  %410 = vmatprep.subr.mxu0 0.0
  %411 = vmatpush1.msra.mxu0 0.0
  %412 = vmatprep.subr.mxu0 0.0
  %413 = vmatpush1.msra.mxu0 0.0
  %414 = vmatprep.mubr.f32.mxu0 0.0
  %415 = vmatmul.mubr.f32.gmra.mrb[0].mxu0 %v348
  %v416 = vpop.f32.mrb[0].mxu0
  %v417 = vadd.f32 0.0, %v416
  %v418 = vpop.f32.mrb[0].mxu0
  %419 = vdwg.mxu0
  %v421 = vrot.slane %v417, 2
  %v423 = vadd.f32 %v105, %v421
  %v424 = vtanh.pop %v423
  %v426 = vrot.slane %v424, 6
  %v427 = vsel %vm113, %v426, 0
  %429 = vmatprep.subr.mxu0 0.0
  %430 = vmatpush1.msra.mxu0 %v16
  %431 = vmatprep.subr.mxu0 0.0
  %432 = vmatpush1.msra.mxu0 %v17
  %433 = vmatprep.subr.mxu0 0.0
  %434 = vmatpush1.msra.mxu0 %v18
  %435 = vmatprep.subr.mxu0 0.0
  %436 = vmatpush1.msra.mxu0 %v19
  %437 = vmatprep.subr.mxu0 0.0
  %438 = vmatpush1.msra.mxu0 0.0
  %439 = vmatprep.subr.mxu0 0.0
  %440 = vmatpush1.msra.mxu0 0.0
  %441 = vmatprep.subr.mxu0 0.0
  %442 = vmatpush1.msra.mxu0 0.0
  %443 = vmatprep.subr.mxu0 0.0
  %444 = vmatpush1.msra.mxu0 0.0
  %445 = vmatprep.subr.mxu0 0.0
  %446 = vmatpush1.msra.mxu0 0.0
  %447 = vmatprep.subr.mxu0 0.0
  %448 = vmatpush1.msra.mxu0 0.0
  %449 = vmatprep.subr.mxu0 0.0
  %450 = vmatpush1.msra.mxu0 0.0
  %451 = vmatprep.subr.mxu0 0.0
  %452 = vmatpush1.msra.mxu0 0.0
  %453 = vmatprep.subr.mxu0 0.0
  %454 = vmatpush1.msra.mxu0 0.0
  %455 = vmatprep.subr.mxu0 0.0
  %456 = vmatpush1.msra.mxu0 0.0
  %457 = vmatprep.subr.mxu0 0.0
  %458 = vmatpush1.msra.mxu0 0.0
  %459 = vmatprep.subr.mxu0 0.0
  %460 = vmatpush1.msra.mxu0 0.0
  %461 = vmatprep.subr.mxu0 0.0
  %462 = vmatpush1.msra.mxu0 0.0
  %463 = vmatprep.subr.mxu0 0.0
  %464 = vmatpush1.msra.mxu0 0.0
  %465 = vmatprep.subr.mxu0 0.0
  %466 = vmatpush1.msra.mxu0 0.0
  %467 = vmatprep.subr.mxu0 0.0
  %468 = vmatpush1.msra.mxu0 0.0
  %469 = vmatprep.subr.mxu0 0.0
  %470 = vmatpush1.msra.mxu0 0.0
  %471 = vmatprep.subr.mxu0 0.0
  %472 = vmatpush1.msra.mxu0 0.0
  %473 = vmatprep.subr.mxu0 0.0
  %474 = vmatpush1.msra.mxu0 0.0
  %475 = vmatprep.subr.mxu0 0.0
  %476 = vmatpush1.msra.mxu0 0.0
  %477 = vmatprep.subr.mxu0 0.0
  %478 = vmatpush1.msra.mxu0 0.0
  %479 = vmatprep.subr.mxu0 0.0
  %480 = vmatpush1.msra.mxu0 0.0
  %481 = vmatprep.subr.mxu0 0.0
  %482 = vmatpush1.msra.mxu0 0.0
  %483 = vmatprep.subr.mxu0 0.0
  %484 = vmatpush1.msra.mxu0 0.0
  %485 = vmatprep.subr.mxu0 0.0
  %486 = vmatpush1.msra.mxu0 0.0
  %487 = vmatprep.subr.mxu0 0.0
  %488 = vmatpush1.msra.mxu0 0.0
  %489 = vmatprep.subr.mxu0 0.0
  %490 = vmatpush1.msra.mxu0 0.0
  %491 = vmatprep.subr.mxu0 0.0
  %492 = vmatpush1.msra.mxu0 0.0
  %493 = vmatprep.mubr.f32.mxu0 0.0
  %494 = vmatmul.mubr.f32.gmra.mrb[0].mxu0 %v427
  %v495 = vpop.f32.mrb[0].mxu0
  %v496 = vadd.f32 0.0, %v495
  %v497 = vpop.f32.mrb[0].mxu0
  %498 = vdwg.mxu0
  %v499 = vadd.f32 %v110, %v496
  %v500 = vtanh.pop %v499
  %v502 = vsel %vm113, %v500, 0
  %504 = vmatprep.subr.mxu0 0.0
  %505 = vmatpush1.msra.mxu0 %v16
  %506 = vmatprep.subr.mxu0 0.0
  %507 = vmatpush1.msra.mxu0 %v17
  %508 = vmatprep.subr.mxu0 0.0
  %509 = vmatpush1.msra.mxu0 %v18
  %510 = vmatprep.subr.mxu0 0.0
  %511 = vmatpush1.msra.mxu0 %v19
  %512 = vmatprep.subr.mxu0 0.0
  %513 = vmatpush1.msra.mxu0 0.0
  %514 = vmatprep.subr.mxu0 0.0
  %515 = vmatpush1.msra.mxu0 0.0
  %516 = vmatprep.subr.mxu0 0.0
  %517 = vmatpush1.msra.mxu0 0.0
  %518 = vmatprep.subr.mxu0 0.0
  %519 = vmatpush1.msra.mxu0 0.0
  %520 = vmatprep.subr.mxu0 0.0
  %521 = vmatpush1.msra.mxu0 0.0
  %522 = vmatprep.subr.mxu0 0.0
  %523 = vmatpush1.msra.mxu0 0.0
  %524 = vmatprep.subr.mxu0 0.0
  %525 = vmatpush1.msra.mxu0 0.0
  %526 = vmatprep.subr.mxu0 0.0
  %527 = vmatpush1.msra.mxu0 0.0
  %528 = vmatprep.subr.mxu0 0.0
  %529 = vmatpush1.msra.mxu0 0.0
  %530 = vmatprep.subr.mxu0 0.0
  %531 = vmatpush1.msra.mxu0 0.0
  %532 = vmatprep.subr.mxu0 0.0
  %533 = vmatpush1.msra.mxu0 0.0
  %534 = vmatprep.subr.mxu0 0.0
  %535 = vmatpush1.msra.mxu0 0.0
  %536 = vmatprep.subr.mxu0 0.0
  %537 = vmatpush1.msra.mxu0 0.0
  %538 = vmatprep.subr.mxu0 0.0
  %539 = vmatpush1.msra.mxu0 0.0
  %540 = vmatprep.subr.mxu0 0.0
  %541 = vmatpush1.msra.mxu0 0.0
  %542 = vmatprep.subr.mxu0 0.0
  %543 = vmatpush1.msra.mxu0 0.0
  %544 = vmatprep.subr.mxu0 0.0
  %545 = vmatpush1.msra.mxu0 0.0
  %546 = vmatprep.subr.mxu0 0.0
  %547 = vmatpush1.msra.mxu0 0.0
  %548 = vmatprep.subr.mxu0 0.0
  %549 = vmatpush1.msra.mxu0 0.0
  %550 = vmatprep.subr.mxu0 0.0
  %551 = vmatpush1.msra.mxu0 0.0
  %552 = vmatprep.subr.mxu0 0.0
  %553 = vmatpush1.msra.mxu0 0.0
  %554 = vmatprep.subr.mxu0 0.0
  %555 = vmatpush1.msra.mxu0 0.0
  %556 = vmatprep.subr.mxu0 0.0
  %557 = vmatpush1.msra.mxu0 0.0
  %558 = vmatprep.subr.mxu0 0.0
  %559 = vmatpush1.msra.mxu0 0.0
  %560 = vmatprep.subr.mxu0 0.0
  %561 = vmatpush1.msra.mxu0 0.0
  %562 = vmatprep.subr.mxu0 0.0
  %563 = vmatpush1.msra.mxu0 0.0
  %564 = vmatprep.subr.mxu0 0.0
  %565 = vmatpush1.msra.mxu0 0.0
  %566 = vmatprep.subr.mxu0 0.0
  %567 = vmatpush1.msra.mxu0 0.0
  %568 = vmatprep.mubr.f32.mxu0 0.0
  %569 = vmatmul.mubr.f32.gmra.mrb[0].mxu0 %v502
  %v570 = vpop.f32.mrb[0].mxu0
  %v571 = vadd.f32 0.0, %v570
  %v572 = vpop.f32.mrb[0].mxu0
  %573 = vdwg.mxu0
  %v575 = vrot.slane %v571, 6
  %v577 = vadd.f32 %v110, %v575
  %v578 = vtanh.pop %v577
  %v580 = vrot.slane %v578, 2
  %v581 = vsel %vm113, %v580, 0
  %583 = vmatprep.subr.mxu0 0.0
  %584 = vmatpush1.msra.mxu0 %v16
  %585 = vmatprep.subr.mxu0 0.0
  %586 = vmatpush1.msra.mxu0 %v17
  %587 = vmatprep.subr.mxu0 0.0
  %588 = vmatpush1.msra.mxu0 %v18
  %589 = vmatprep.subr.mxu0 0.0
  %590 = vmatpush1.msra.mxu0 %v19
  %591 = vmatprep.subr.mxu0 0.0
  %592 = vmatpush1.msra.mxu0 0.0
  %593 = vmatprep.subr.mxu0 0.0
  %594 = vmatpush1.msra.mxu0 0.0
  %595 = vmatprep.subr.mxu0 0.0
  %596 = vmatpush1.msra.mxu0 0.0
  %597 = vmatprep.subr.mxu0 0.0
  %598 = vmatpush1.msra.mxu0 0.0
  %599 = vmatprep.subr.mxu0 0.0
  %600 = vmatpush1.msra.mxu0 0.0
  %601 = vmatprep.subr.mxu0 0.0
  %602 = vmatpush1.msra.mxu0 0.0
  %603 = vmatprep.subr.mxu0 0.0
  %604 = vmatpush1.msra.mxu0 0.0
  %605 = vmatprep.subr.mxu0 0.0
  %606 = vmatpush1.msra.mxu0 0.0
  %607 = vmatprep.subr.mxu0 0.0
  %608 = vmatpush1.msra.mxu0 0.0
  %609 = vmatprep.subr.mxu0 0.0
  %610 = vmatpush1.msra.mxu0 0.0
  %611 = vmatprep.subr.mxu0 0.0
  %612 = vmatpush1.msra.mxu0 0.0
  %613 = vmatprep.subr.mxu0 0.0
  %614 = vmatpush1.msra.mxu0 0.0
  %615 = vmatprep.subr.mxu0 0.0
  %616 = vmatpush1.msra.mxu0 0.0
  %617 = vmatprep.subr.mxu0 0.0
  %618 = vmatpush1.msra.mxu0 0.0
  %619 = vmatprep.subr.mxu0 0.0
  %620 = vmatpush1.msra.mxu0 0.0
  %621 = vmatprep.subr.mxu0 0.0
  %622 = vmatpush1.msra.mxu0 0.0
  %623 = vmatprep.subr.mxu0 0.0
  %624 = vmatpush1.msra.mxu0 0.0
  %625 = vmatprep.subr.mxu0 0.0
  %626 = vmatpush1.msra.mxu0 0.0
  %627 = vmatprep.subr.mxu0 0.0
  %628 = vmatpush1.msra.mxu0 0.0
  %629 = vmatprep.subr.mxu0 0.0
  %630 = vmatpush1.msra.mxu0 0.0
  %631 = vmatprep.subr.mxu0 0.0
  %632 = vmatpush1.msra.mxu0 0.0
  %633 = vmatprep.subr.mxu0 0.0
  %634 = vmatpush1.msra.mxu0 0.0
  %635 = vmatprep.subr.mxu0 0.0
  %636 = vmatpush1.msra.mxu0 0.0
  %637 = vmatprep.subr.mxu0 0.0
  %638 = vmatpush1.msra.mxu0 0.0
  %639 = vmatprep.subr.mxu0 0.0
  %640 = vmatpush1.msra.mxu0 0.0
  %641 = vmatprep.subr.mxu0 0.0
  %642 = vmatpush1.msra.mxu0 0.0
  %643 = vmatprep.subr.mxu0 0.0
  %644 = vmatpush1.msra.mxu0 0.0
  %645 = vmatprep.subr.mxu0 0.0
  %646 = vmatpush1.msra.mxu0 0.0
  %647 = vmatprep.mubr.f32.mxu0 0.0
  %648 = vmatmul.mubr.f32.gmra.mrb[0].mxu0 %v581
  %v649 = vpop.f32.mrb[0].mxu0
  %v650 = vadd.f32 0.0, %v649
  %v651 = vpop.f32.mrb[0].mxu0
  %652 = vdwg.mxu0
  %v654 = vrot.slane %v650, 4
  %v656 = vadd.f32 %v110, %v654
  %v657 = vtanh.pop %v656
  %v659 = vrot.slane %v657, 4
  %v660 = vsel %vm113, %v659, 0
  %662 = vmatprep.subr.mxu0 0.0
  %663 = vmatpush1.msra.mxu0 %v16
  %664 = vmatprep.subr.mxu0 0.0
  %665 = vmatpush1.msra.mxu0 %v17
  %666 = vmatprep.subr.mxu0 0.0
  %667 = vmatpush1.msra.mxu0 %v18
  %668 = vmatprep.subr.mxu0 0.0
  %669 = vmatpush1.msra.mxu0 %v19
  %670 = vmatprep.subr.mxu0 0.0
  %671 = vmatpush1.msra.mxu0 0.0
  %672 = vmatprep.subr.mxu0 0.0
  %673 = vmatpush1.msra.mxu0 0.0
  %674 = vmatprep.subr.mxu0 0.0
  %675 = vmatpush1.msra.mxu0 0.0
  %676 = vmatprep.subr.mxu0 0.0
  %677 = vmatpush1.msra.mxu0 0.0
  %678 = vmatprep.subr.mxu0 0.0
  %679 = vmatpush1.msra.mxu0 0.0
  %680 = vmatprep.subr.mxu0 0.0
  %681 = vmatpush1.msra.mxu0 0.0
  %682 = vmatprep.subr.mxu0 0.0
  %683 = vmatpush1.msra.mxu0 0.0
  %684 = vmatprep.subr.mxu0 0.0
  %685 = vmatpush1.msra.mxu0 0.0
  %686 = vmatprep.subr.mxu0 0.0
  %687 = vmatpush1.msra.mxu0 0.0
  %688 = vmatprep.subr.mxu0 0.0
  %689 = vmatpush1.msra.mxu0 0.0
  %690 = vmatprep.subr.mxu0 0.0
  %691 = vmatpush1.msra.mxu0 0.0
  %692 = vmatprep.subr.mxu0 0.0
  %693 = vmatpush1.msra.mxu0 0.0
  %694 = vmatprep.subr.mxu0 0.0
  %695 = vmatpush1.msra.mxu0 0.0
  %696 = vmatprep.subr.mxu0 0.0
  %697 = vmatpush1.msra.mxu0 0.0
  %698 = vmatprep.subr.mxu0 0.0
  %699 = vmatpush1.msra.mxu0 0.0
  %700 = vmatprep.subr.mxu0 0.0
  %701 = vmatpush1.msra.mxu0 0.0
  %702 = vmatprep.subr.mxu0 0.0
  %703 = vmatpush1.msra.mxu0 0.0
  %704 = vmatprep.subr.mxu0 0.0
  %705 = vmatpush1.msra.mxu0 0.0
  %706 = vmatprep.subr.mxu0 0.0
  %707 = vmatpush1.msra.mxu0 0.0
  %708 = vmatprep.subr.mxu0 0.0
  %709 = vmatpush1.msra.mxu0 0.0
  %710 = vmatprep.subr.mxu0 0.0
  %711 = vmatpush1.msra.mxu0 0.0
  %712 = vmatprep.subr.mxu0 0.0
  %713 = vmatpush1.msra.mxu0 0.0
  %714 = vmatprep.subr.mxu0 0.0
  %715 = vmatpush1.msra.mxu0 0.0
  %716 = vmatprep.subr.mxu0 0.0
  %717 = vmatpush1.msra.mxu0 0.0
  %718 = vmatprep.subr.mxu0 0.0
  %719 = vmatpush1.msra.mxu0 0.0
  %720 = vmatprep.subr.mxu0 0.0
  %721 = vmatpush1.msra.mxu0 0.0
  %722 = vmatprep.subr.mxu0 0.0
  %723 = vmatpush1.msra.mxu0 0.0
  %724 = vmatprep.subr.mxu0 0.0
  %725 = vmatpush1.msra.mxu0 0.0
  %726 = vmatprep.mubr.f32.mxu0 0.0
  %727 = vmatmul.mubr.f32.gmra.mrb[0].mxu0 %v660
  %v728 = vpop.f32.mrb[0].mxu0
  %v729 = vadd.f32 0.0, %v728
  %v730 = vpop.f32.mrb[0].mxu0
  %731 = vdwg.mxu0
  %v733 = vrot.slane %v729, 2
  %v735 = vadd.f32 %v110, %v733
  %v736 = vtanh.pop %v735
  %v737 = vlaneseq
  %v738 = vshrl.u32 %v737, 7
  %v739 = vsub.s32 1, %v738
  %v740 = vrot.slane %v24, %v739
  %v742 = vrot.slane %v736, 6
  %v743 = vsel %vm113, %v742, 0
  %745 = vmatprep.subr.mxu0 0.0
  %746 = vmatpush1.msra.mxu0 %v20
  %747 = vmatprep.subr.mxu0 0.0
  %748 = vmatpush1.msra.mxu0 %v21
  %749 = vmatprep.subr.mxu0 0.0
  %750 = vmatpush1.msra.mxu0 %v22
  %751 = vmatprep.subr.mxu0 0.0
  %752 = vmatpush1.msra.mxu0 %v23
  %753 = vmatprep.subr.mxu0 0.0
  %754 = vmatpush1.msra.mxu0 0.0
  %755 = vmatprep.subr.mxu0 0.0
  %756 = vmatpush1.msra.mxu0 0.0
  %757 = vmatprep.subr.mxu0 0.0
  %758 = vmatpush1.msra.mxu0 0.0
  %759 = vmatprep.subr.mxu0 0.0
  %760 = vmatpush1.msra.mxu0 0.0
  %761 = vmatprep.subr.mxu0 0.0
  %762 = vmatpush1.msra.mxu0 0.0
  %763 = vmatprep.subr.mxu0 0.0
  %764 = vmatpush1.msra.mxu0 0.0
  %765 = vmatprep.subr.mxu0 0.0
  %766 = vmatpush1.msra.mxu0 0.0
  %767 = vmatprep.subr.mxu0 0.0
  %768 = vmatpush1.msra.mxu0 0.0
  %769 = vmatprep.subr.mxu0 0.0
  %770 = vmatpush1.msra.mxu0 0.0
  %771 = vmatprep.subr.mxu0 0.0
  %772 = vmatpush1.msra.mxu0 0.0
  %773 = vmatprep.subr.mxu0 0.0
  %774 = vmatpush1.msra.mxu0 0.0
  %775 = vmatprep.subr.mxu0 0.0
  %776 = vmatpush1.msra.mxu0 0.0
  %777 = vmatprep.subr.mxu0 0.0
  %778 = vmatpush1.msra.mxu0 0.0
  %779 = vmatprep.subr.mxu0 0.0
  %780 = vmatpush1.msra.mxu0 0.0
  %781 = vmatprep.subr.mxu0 0.0
  %782 = vmatpush1.msra.mxu0 0.0
  %783 = vmatprep.subr.mxu0 0.0
  %784 = vmatpush1.msra.mxu0 0.0
  %785 = vmatprep.subr.mxu0 0.0
  %786 = vmatpush1.msra.mxu0 0.0
  %787 = vmatprep.subr.mxu0 0.0
  %788 = vmatpush1.msra.mxu0 0.0
  %789 = vmatprep.subr.mxu0 0.0
  %790 = vmatpush1.msra.mxu0 0.0
  %791 = vmatprep.subr.mxu0 0.0
  %792 = vmatpush1.msra.mxu0 0.0
  %793 = vmatprep.subr.mxu0 0.0
  %794 = vmatpush1.msra.mxu0 0.0
  %795 = vmatprep.subr.mxu0 0.0
  %796 = vmatpush1.msra.mxu0 0.0
  %797 = vmatprep.subr.mxu0 0.0
  %798 = vmatpush1.msra.mxu0 0.0
  %799 = vmatprep.subr.mxu0 0.0
  %800 = vmatpush1.msra.mxu0 0.0
  %801 = vmatprep.subr.mxu0 0.0
  %802 = vmatpush1.msra.mxu0 0.0
  %803 = vmatprep.subr.mxu0 0.0
  %804 = vmatpush1.msra.mxu0 0.0
  %805 = vmatprep.subr.mxu0 0.0
  %806 = vmatpush1.msra.mxu0 0.0
  %807 = vmatprep.subr.mxu0 0.0
  %808 = vmatpush1.msra.mxu0 0.0
  %809 = vmatprep.mubr.f32.mxu0 0.0
  %810 = vmatmul.mubr.f32.gmra.mrb[0].mxu0 %v743
  %v811 = vpop.f32.mrb[0].mxu0
  %v812 = vadd.f32 %v740, %v811
  %v813 = vpop.f32.mrb[0].mxu0
  %814 = vdwg.mxu0
  %v815 = vtanh.pop %v812
  %v816 = vlaneseq
  %v817 = vshrl.u32 %v816, 7
  %v818 = vsub.s32 2, %v817
  %v819 = vrot.slane %v24, %v818
  %v820 = vmul.f32 %v815, %v819
  %vm821 = vcmask 254976
  %v822 = vsel %vm821, %v820, 0.0
  %823 = vadd.xlane.f32.xlu0 %v822
  %v824 = vpop.xlane.xlu0 %823
  %v825 = vlaneseq
  %v826 = vshrl.u32 %v825, 7
  %v827 = vsub.s32 3, %v826
  %v828 = vrot.slane %v24, %v827
  %v829 = vadd.f32 %v824, %v828
  %v830 = vxor.u32 %v829, 2147483648
  %v831 = vmul.f32 %v830, 1.442695
  %v832 = vpow.pop %v831
  %v833 = vadd.f32 %v832, 1.0
  %v834 = vrcp.pop %v833
  %v835 = vmul.f32 1.0, %v834
  %vm836 = vcmask 1024
  %837 = vst.msk [vmem:[%s3] sm:$0x3] %vm836, %v835
  // Predicated region
  $region14: #{tpu_custom_call.1} parent=0 // pred_check
    _
  $region15: #{tpu_custom_call.1} parent=0 // pred_check_branch
    %839 = sbr.rel (0) target = $region17
  $region16: #{tpu_custom_call.1} parent=0 // pred_region
    _
  $region17: #{tpu_custom_call.1} parent=0 // pred_fallthru
    _
  // Predicated region
  $region18: #{tpu_custom_call.1} parent=0 // pred_check
    _
  $region19: #{tpu_custom_call.1} parent=0 // pred_check_branch
    %841 = sbr.rel (0) target = $region21
  $region20: #{tpu_custom_call.1} parent=0 // pred_region
    _
  $region21: #{tpu_custom_call.1} parent=0 // pred_fallthru
    _

</llo_original>
